<compile_context>
chip_gen: v7x
topology: tpu7x:2x2x1
jax: 0.10.0
libtpu: 0.0.40
codegen_flags: <defaults>
</compile_context>

<pallas_src>
import functools
import math

import jax
import jax.numpy as jnp
import numpy as np
from jax.experimental import pallas as pl
from jax.experimental.pallas import tpu as pltpu

LOG_SIG_MAX = 2.0
LOG_SIG_MIN = -20.0
_HALF_LOG_2PI = 0.5 * math.log(2.0 * math.pi)


def _round_up(a, b):
    return (a + b - 1) // b * b


# ----------------------------------------------------------------------------
# Fused kernel:
#   x     : (tile_m, D_in)  f32
#   eps   : (tile_m, L)     f32   (standard normal noise for rsample)
#   w1    : (D_in, H) bf16, b1 : (1, H) f32
#   w2    : (H, H)    bf16, b2 : (1, H) f32
#   wm    : (H, L)    bf16, bm : (1, L) f32
#   ws    : (H, L)    bf16, bs : (1, L) f32
#   outs  : delta, mean, log_std, log_prob : (tile_m, L) f32
# ----------------------------------------------------------------------------
def _gaussian_policy_kernel(x_ref, eps_ref,
                            w1_ref, b1_ref, w2_ref, b2_ref,
                            wm_ref, bm_ref, ws_ref, bs_ref,
                            delta_ref, mean_ref, logstd_ref, logp_ref):
    bf = jnp.bfloat16

    x = x_ref[...].astype(bf)
    h1 = jnp.maximum(
        jnp.dot(x, w1_ref[...], preferred_element_type=jnp.float32)
        + b1_ref[...], 0.0)
    h2 = jnp.maximum(
        jnp.dot(h1.astype(bf), w2_ref[...], preferred_element_type=jnp.float32)
        + b2_ref[...], 0.0)

    h2b = h2.astype(bf)
    mean = jnp.dot(h2b, wm_ref[...], preferred_element_type=jnp.float32) + bm_ref[...]
    log_std = jnp.dot(h2b, ws_ref[...], preferred_element_type=jnp.float32) + bs_ref[...]
    log_std = jnp.clip(log_std, LOG_SIG_MIN, LOG_SIG_MAX)

    std = jnp.exp(log_std)                       # EUP
    eps = eps_ref[...]
    delta = mean + std * eps                      # rsample
    diff = delta - mean
    log_prob = -(diff * diff) / (2.0 * std * std) - log_std - _HALF_LOG_2PI

    delta_ref[...] = delta
    mean_ref[...] = mean
    logstd_ref[...] = log_std
    logp_ref[...] = log_prob


def _policy_pallas(x2d, eps, w1, b1, w2, b2, wm, bm, ws, bs, *, tile_m):
    M, d_in = x2d.shape
    hdim = w1.shape[1]
    latent = wm.shape[1]
    assert M % tile_m == 0

    row = lambda i: (i, 0)
    rep = lambda i: (0, 0)
    out_sds = jax.ShapeDtypeStruct((M, latent), jnp.float32)
    out_spec = pl.BlockSpec((tile_m, latent), row)

    return pl.pallas_call(
        _gaussian_policy_kernel,
        out_shape=(out_sds, out_sds, out_sds, out_sds),
        grid_spec=pltpu.PrefetchScalarGridSpec(
            num_scalar_prefetch=0,
            grid=(M // tile_m,),
            in_specs=[
                pl.BlockSpec((tile_m, d_in), row),      # x rows
                pl.BlockSpec((tile_m, latent), row),    # eps rows
                pl.BlockSpec((d_in, hdim), rep),        # w1 (resident)
                pl.BlockSpec((1, hdim), rep),           # b1
                pl.BlockSpec((hdim, hdim), rep),        # w2
                pl.BlockSpec((1, hdim), rep),           # b2
                pl.BlockSpec((hdim, latent), rep),      # wm
                pl.BlockSpec((1, latent), rep),         # bm
                pl.BlockSpec((hdim, latent), rep),      # ws
                pl.BlockSpec((1, latent), rep),         # bs
            ],
            out_specs=[out_spec, out_spec, out_spec, out_spec],
        ),
        compiler_params=pltpu.CompilerParams(
            dimension_semantics=("parallel",),
            vmem_limit_bytes=32 * 1024 * 1024,
        ),
    )(x2d, eps, w1, b1, w2, b2, wm, bm, ws, bs)


# ----------------------------------------------------------------------------
# Module wrapper (GaussianPolicy.forward, decode=False)
# ----------------------------------------------------------------------------
@functools.partial(jax.jit, static_argnames=("tile_m_cap",))
def gaussian_policy_forward(x_nchw, params, eps, *, tile_m_cap=256):
    batch, chan, h, w = x_nchw.shape
    assert chan == 1, "squeeze(1) path in GaussianPolicy implies a single channel"
    d_in = h * w
    latent = params["wm"].shape[1]

    x2d = x_nchw.reshape(batch, d_in).astype(jnp.float32)

    # Pad rows to a sublane-friendly row tile; grid iterates over row tiles.
    tile_m = min(tile_m_cap, _round_up(batch, 8))
    m_pad = _round_up(batch, tile_m)
    if m_pad != batch:
        x2d = jnp.pad(x2d, ((0, m_pad - batch), (0, 0)))
        eps_p = jnp.pad(eps, ((0, m_pad - batch), (0, 0)))
    else:
        eps_p = eps

    bf = jnp.bfloat16
    delta, mean, log_std, log_prob = _policy_pallas(
        x2d, eps_p,
        params["w1"].astype(bf), params["b1"].reshape(1, -1),
        params["w2"].astype(bf), params["b2"].reshape(1, -1),
        params["wm"].astype(bf), params["bm"].reshape(1, -1),
        params["ws"].astype(bf), params["bs"].reshape(1, -1),
        tile_m=tile_m)

    delta = delta[:batch].reshape(batch, chan, h, w)
    return delta, mean[:batch], log_std[:batch], log_prob[:batch]


# ----------------------------------------------------------------------------
# Parameter init (xavier-uniform weights like weights_init; PyTorch-style bias)
# Weights stored as (in_features, out_features) so forward is x @ W + b.
# ----------------------------------------------------------------------------
def init_params(key, input_size, hidden_size, latent):
    def linear(k, fan_in, fan_out):
        kw, kb = jax.random.split(k)
        limit = math.sqrt(6.0 / (fan_in + fan_out))
        wgt = jax.random.uniform(kw, (fan_in, fan_out), jnp.float32, -limit, limit)
        bnd = 1.0 / math.sqrt(fan_in)
        b = jax.random.uniform(kb, (fan_out,), jnp.float32, -bnd, bnd)
        return wgt, b

    k1, k2, k3, k4 = jax.random.split(key, 4)
    w1, b1 = linear(k1, input_size, hidden_size)
    w2, b2 = linear(k2, hidden_size, hidden_size)
    wm, bm = linear(k3, hidden_size, latent)
    ws, bs = linear(k4, hidden_size, latent)
    return {"w1": w1, "b1": b1, "w2": w2, "b2": b2,
            "wm": wm, "bm": bm, "ws": ws, "bs": bs}


# ----------------------------------------------------------------------------
# Pure-JAX reference (PyTorch semantics; same bf16 matmul-input cast)
# ----------------------------------------------------------------------------
def gaussian_policy_ref(x_nchw, params, eps):
    batch, chan, h, w = x_nchw.shape
    x = x_nchw.reshape(batch, h * w).astype(jnp.float32)
    bf = jnp.bfloat16

    def mm(a, wgt):
        return jnp.dot(a.astype(bf), wgt.astype(bf),
                       preferred_element_type=jnp.float32)

    h1 = jnp.maximum(mm(x, params["w1"]) + params["b1"], 0.0)
    h2 = jnp.maximum(mm(h1, params["w2"]) + params["b2"], 0.0)
    mean = mm(h2, params["wm"]) + params["bm"]
    log_std = jnp.clip(mm(h2, params["ws"]) + params["bs"],
                       LOG_SIG_MIN, LOG_SIG_MAX)
    std = jnp.exp(log_std)
    delta = mean + std * eps
    diff = delta - mean
    log_prob = -(diff * diff) / (2.0 * std * std) - log_std - _HALF_LOG_2PI
    return delta.reshape(batch, chan, h, w), mean, log_std, log_prob


if __name__ == "__main__":
    batch, chan, h, w = 2, 1, 16, 16
    input_size = h * w            # 256
    hidden_size = 128             # lane-dense hidden
    latent = input_size           # decode=False => latent == input_size

    key = jax.random.PRNGKey(0)
    kx, kp, ke = jax.random.split(key, 3)
    x = jax.random.normal(kx, (batch, chan, h, w), jnp.float32)
    params = init_params(kp, input_size, hidden_size, latent)
    eps = jax.random.normal(ke, (batch, latent), jnp.float32)

    delta, mean, log_std, log_prob = jax.block_until_ready(
        gaussian_policy_forward(x, params, eps))

    d_ref, m_ref, ls_ref, lp_ref = gaussian_policy_ref(x, params, eps)

    assert delta.shape == (batch, chan, h, w), delta.shape
    assert mean.shape == (batch, latent), mean.shape
    assert log_std.shape == (batch, latent), log_std.shape
    assert log_prob.shape == (batch, latent), log_prob.shape

    np.testing.assert_allclose(np.asarray(delta), np.asarray(d_ref),
                               rtol=1e-3, atol=1e-3)
    np.testing.assert_allclose(np.asarray(mean), np.asarray(m_ref),
                               rtol=1e-3, atol=1e-3)
    np.testing.assert_allclose(np.asarray(log_std), np.asarray(ls_ref),
                               rtol=1e-3, atol=1e-3)
    np.testing.assert_allclose(np.asarray(log_prob), np.asarray(lp_ref),
                               rtol=1e-3, atol=1e-3)

    print("KERNEL_OK")
</pallas_src>

<mosaic_0001>
module attributes {stable_mosaic.version = 11 : i64} {
  func.func @_gaussian_policy_kernel(%arg0: i32, %arg1: memref<8x256xf32, #tpu.memory_space<vmem>>, %arg2: memref<8x256xf32, #tpu.memory_space<vmem>>, %arg3: memref<256x128xbf16, #tpu.memory_space<vmem>>, %arg4: memref<1x128xf32, #tpu.memory_space<vmem>>, %arg5: memref<128x128xbf16, #tpu.memory_space<vmem>>, %arg6: memref<1x128xf32, #tpu.memory_space<vmem>>, %arg7: memref<128x256xbf16, #tpu.memory_space<vmem>>, %arg8: memref<1x256xf32, #tpu.memory_space<vmem>>, %arg9: memref<128x256xbf16, #tpu.memory_space<vmem>>, %arg10: memref<1x256xf32, #tpu.memory_space<vmem>>, %arg11: memref<8x256xf32, #tpu.memory_space<vmem>>, %arg12: memref<8x256xf32, #tpu.memory_space<vmem>>, %arg13: memref<8x256xf32, #tpu.memory_space<vmem>>, %arg14: memref<8x256xf32, #tpu.memory_space<vmem>>) attributes {dimension_semantics = [#tpu.dimension_semantics<parallel>], iteration_bounds = array<i64: 1>, scalar_prefetch = 0 : i64, scratch_operands = 0 : i64, tpu.core_type = #tpu.core_type<tc>, window_params = [{transform_indices = @transform_0, window_bounds = array<i64: 8, 256>}, {transform_indices = @transform_1, window_bounds = array<i64: 8, 256>}, {pipeline_mode = #tpu.pipeline_mode<synchronous>, transform_indices = @transform_2, window_bounds = array<i64: 256, 128>}, {pipeline_mode = #tpu.pipeline_mode<synchronous>, transform_indices = @transform_3, window_bounds = array<i64: 1, 128>}, {pipeline_mode = #tpu.pipeline_mode<synchronous>, transform_indices = @transform_4, window_bounds = array<i64: 128, 128>}, {pipeline_mode = #tpu.pipeline_mode<synchronous>, transform_indices = @transform_5, window_bounds = array<i64: 1, 128>}, {pipeline_mode = #tpu.pipeline_mode<synchronous>, transform_indices = @transform_6, window_bounds = array<i64: 128, 256>}, {pipeline_mode = #tpu.pipeline_mode<synchronous>, transform_indices = @transform_7, window_bounds = array<i64: 1, 256>}, {pipeline_mode = #tpu.pipeline_mode<synchronous>, transform_indices = @transform_8, window_bounds = array<i64: 128, 256>}, {pipeline_mode = #tpu.pipeline_mode<synchronous>, transform_indices = @transform_9, window_bounds = array<i64: 1, 256>}, {transform_indices = @transform_10, window_bounds = array<i64: 8, 256>}, {transform_indices = @transform_11, window_bounds = array<i64: 8, 256>}, {transform_indices = @transform_12, window_bounds = array<i64: 8, 256>}, {transform_indices = @transform_13, window_bounds = array<i64: 8, 256>}]} {
    %c0 = arith.constant 0 : index
    %c0_0 = arith.constant 0 : index
    %0 = vector.load %arg1[%c0, %c0_0] : memref<8x256xf32, #tpu.memory_space<vmem>>, vector<8x256xf32>
    %1 = arith.truncf %0 : vector<8x256xf32> to vector<8x256xbf16>
    %c0_1 = arith.constant 0 : index
    %c0_2 = arith.constant 0 : index
    %2 = vector.load %arg3[%c0_1, %c0_2] : memref<256x128xbf16, #tpu.memory_space<vmem>>, vector<256x128xbf16>
    %cst = arith.constant dense<0.000000e+00> : vector<8x128xf32>
    %3 = tpu.matmul %1, %2, %cst {dimension_numbers = #tpu.dot_dimension_numbers<[1], [0], [0], [1], [0, 0, 1, 1], [], []>} : vector<8x256xbf16>, vector<256x128xbf16>, vector<8x128xf32> -> vector<8x128xf32>
    %c0_3 = arith.constant 0 : index
    %c0_4 = arith.constant 0 : index
    %4 = vector.load %arg4[%c0_3, %c0_4] : memref<1x128xf32, #tpu.memory_space<vmem>>, vector<1x128xf32>
    %5 = vector.broadcast %4 : vector<1x128xf32> to vector<8x128xf32>
    %6 = arith.addf %3, %5 : vector<8x128xf32>
    %cst_5 = arith.constant 0.000000e+00 : f32
    %7 = vector.broadcast %cst_5 : f32 to vector<8x128xf32>
    %8 = arith.maximumf %6, %7 : vector<8x128xf32>
    %9 = arith.truncf %8 : vector<8x128xf32> to vector<8x128xbf16>
    %c0_6 = arith.constant 0 : index
    %c0_7 = arith.constant 0 : index
    %10 = vector.load %arg5[%c0_6, %c0_7] : memref<128x128xbf16, #tpu.memory_space<vmem>>, vector<128x128xbf16>
    %cst_8 = arith.constant dense<0.000000e+00> : vector<8x128xf32>
    %11 = tpu.matmul %9, %10, %cst_8 {dimension_numbers = #tpu.dot_dimension_numbers<[1], [0], [0], [1], [0, 0, 1, 1], [], []>} : vector<8x128xbf16>, vector<128x128xbf16>, vector<8x128xf32> -> vector<8x128xf32>
    %c0_9 = arith.constant 0 : index
    %c0_10 = arith.constant 0 : index
    %12 = vector.load %arg6[%c0_9, %c0_10] : memref<1x128xf32, #tpu.memory_space<vmem>>, vector<1x128xf32>
    %13 = vector.broadcast %12 : vector<1x128xf32> to vector<8x128xf32>
    %14 = arith.addf %11, %13 : vector<8x128xf32>
    %cst_11 = arith.constant 0.000000e+00 : f32
    %15 = vector.broadcast %cst_11 : f32 to vector<8x128xf32>
    %16 = arith.maximumf %14, %15 : vector<8x128xf32>
    %17 = arith.truncf %16 : vector<8x128xf32> to vector<8x128xbf16>
    %c0_12 = arith.constant 0 : index
    %c0_13 = arith.constant 0 : index
    %18 = vector.load %arg7[%c0_12, %c0_13] : memref<128x256xbf16, #tpu.memory_space<vmem>>, vector<128x256xbf16>
    %cst_14 = arith.constant dense<0.000000e+00> : vector<8x256xf32>
    %19 = tpu.matmul %17, %18, %cst_14 {dimension_numbers = #tpu.dot_dimension_numbers<[1], [0], [0], [1], [0, 0, 1, 1], [], []>} : vector<8x128xbf16>, vector<128x256xbf16>, vector<8x256xf32> -> vector<8x256xf32>
    %c0_15 = arith.constant 0 : index
    %c0_16 = arith.constant 0 : index
    %20 = vector.load %arg8[%c0_15, %c0_16] : memref<1x256xf32, #tpu.memory_space<vmem>>, vector<1x256xf32>
    %21 = vector.broadcast %20 : vector<1x256xf32> to vector<8x256xf32>
    %22 = arith.addf %19, %21 : vector<8x256xf32>
    %c0_17 = arith.constant 0 : index
    %c0_18 = arith.constant 0 : index
    %23 = vector.load %arg9[%c0_17, %c0_18] : memref<128x256xbf16, #tpu.memory_space<vmem>>, vector<128x256xbf16>
    %cst_19 = arith.constant dense<0.000000e+00> : vector<8x256xf32>
    %24 = tpu.matmul %17, %23, %cst_19 {dimension_numbers = #tpu.dot_dimension_numbers<[1], [0], [0], [1], [0, 0, 1, 1], [], []>} : vector<8x128xbf16>, vector<128x256xbf16>, vector<8x256xf32> -> vector<8x256xf32>
    %c0_20 = arith.constant 0 : index
    %c0_21 = arith.constant 0 : index
    %25 = vector.load %arg10[%c0_20, %c0_21] : memref<1x256xf32, #tpu.memory_space<vmem>>, vector<1x256xf32>
    %26 = vector.broadcast %25 : vector<1x256xf32> to vector<8x256xf32>
    %27 = arith.addf %24, %26 : vector<8x256xf32>
    %cst_22 = arith.constant -2.000000e+01 : f32
    %cst_23 = arith.constant 2.000000e+00 : f32
    %28 = vector.broadcast %cst_22 : f32 to vector<8x256xf32>
    %29 = arith.maximumf %28, %27 : vector<8x256xf32>
    %30 = vector.broadcast %cst_23 : f32 to vector<8x256xf32>
    %31 = arith.minimumf %30, %29 : vector<8x256xf32>
    %32 = math.exp %31 : vector<8x256xf32>
    %c0_24 = arith.constant 0 : index
    %c0_25 = arith.constant 0 : index
    %33 = vector.load %arg2[%c0_24, %c0_25] : memref<8x256xf32, #tpu.memory_space<vmem>>, vector<8x256xf32>
    %34 = arith.mulf %32, %33 : vector<8x256xf32>
    %35 = arith.addf %22, %34 : vector<8x256xf32>
    %36 = arith.subf %35, %22 : vector<8x256xf32>
    %37 = arith.mulf %36, %36 : vector<8x256xf32>
    %cst_26 = arith.constant 0.000000e+00 : f32
    %38 = vector.broadcast %cst_26 : f32 to vector<8x256xf32>
    %39 = arith.subf %38, %37 : vector<8x256xf32>
    %cst_27 = arith.constant 2.000000e+00 : f32
    %40 = vector.broadcast %cst_27 : f32 to vector<8x256xf32>
    %41 = arith.mulf %40, %32 : vector<8x256xf32>
    %42 = arith.mulf %41, %32 : vector<8x256xf32>
    %43 = arith.divf %39, %42 : vector<8x256xf32>
    %44 = arith.subf %43, %31 : vector<8x256xf32>
    %cst_28 = arith.constant 0.918938517 : f32
    %45 = vector.broadcast %cst_28 : f32 to vector<8x256xf32>
    %46 = arith.subf %44, %45 : vector<8x256xf32>
    %c0_29 = arith.constant 0 : index
    %c0_30 = arith.constant 0 : index
    %47 = vector.load %arg11[%c0_29, %c0_30] : memref<8x256xf32, #tpu.memory_space<vmem>>, vector<8x256xf32>
    tpu.vector_store %arg11[%c0_29, %c0_30], %35 {strides = array<i32>} : memref<8x256xf32, #tpu.memory_space<vmem>>, vector<8x256xf32>,
    %c0_31 = arith.constant 0 : index
    %c0_32 = arith.constant 0 : index
    %48 = vector.load %arg12[%c0_31, %c0_32] : memref<8x256xf32, #tpu.memory_space<vmem>>, vector<8x256xf32>
    tpu.vector_store %arg12[%c0_31, %c0_32], %22 {strides = array<i32>} : memref<8x256xf32, #tpu.memory_space<vmem>>, vector<8x256xf32>,
    %c0_33 = arith.constant 0 : index
    %c0_34 = arith.constant 0 : index
    %49 = vector.load %arg13[%c0_33, %c0_34] : memref<8x256xf32, #tpu.memory_space<vmem>>, vector<8x256xf32>
    tpu.vector_store %arg13[%c0_33, %c0_34], %31 {strides = array<i32>} : memref<8x256xf32, #tpu.memory_space<vmem>>, vector<8x256xf32>,
    %c0_35 = arith.constant 0 : index
    %c0_36 = arith.constant 0 : index
    %50 = vector.load %arg14[%c0_35, %c0_36] : memref<8x256xf32, #tpu.memory_space<vmem>>, vector<8x256xf32>
    tpu.vector_store %arg14[%c0_35, %c0_36], %46 {strides = array<i32>} : memref<8x256xf32, #tpu.memory_space<vmem>>, vector<8x256xf32>,
    return
  }
  func.func @transform_0(%arg0: i32) -> (i32, i32) {
    %c0_i32 = arith.constant 0 : i32
    %c0_i32_0 = arith.constant 0 : i32
    return %arg0, %c0_i32 : i32, i32
  }
  func.func @transform_1(%arg0: i32) -> (i32, i32) {
    %c0_i32 = arith.constant 0 : i32
    %c0_i32_0 = arith.constant 0 : i32
    return %arg0, %c0_i32 : i32, i32
  }
  func.func @transform_2(%arg0: i32) -> (i32, i32) {
    %c0_i32 = arith.constant 0 : i32
    %c0_i32_0 = arith.constant 0 : i32
    %c0_i32_1 = arith.constant 0 : i32
    return %c0_i32, %c0_i32_0 : i32, i32
  }
  func.func @transform_3(%arg0: i32) -> (i32, i32) {
    %c0_i32 = arith.constant 0 : i32
    %c0_i32_0 = arith.constant 0 : i32
    %c0_i32_1 = arith.constant 0 : i32
    return %c0_i32, %c0_i32_0 : i32, i32
  }
  func.func @transform_4(%arg0: i32) -> (i32, i32) {
    %c0_i32 = arith.constant 0 : i32
    %c0_i32_0 = arith.constant 0 : i32
    %c0_i32_1 = arith.constant 0 : i32
    return %c0_i32, %c0_i32_0 : i32, i32
  }
  func.func @transform_5(%arg0: i32) -> (i32, i32) {
    %c0_i32 = arith.constant 0 : i32
    %c0_i32_0 = arith.constant 0 : i32
    %c0_i32_1 = arith.constant 0 : i32
    return %c0_i32, %c0_i32_0 : i32, i32
  }
  func.func @transform_6(%arg0: i32) -> (i32, i32) {
    %c0_i32 = arith.constant 0 : i32
    %c0_i32_0 = arith.constant 0 : i32
    %c0_i32_1 = arith.constant 0 : i32
    return %c0_i32, %c0_i32_0 : i32, i32
  }
  func.func @transform_7(%arg0: i32) -> (i32, i32) {
    %c0_i32 = arith.constant 0 : i32
    %c0_i32_0 = arith.constant 0 : i32
    %c0_i32_1 = arith.constant 0 : i32
    return %c0_i32, %c0_i32_0 : i32, i32
  }
  func.func @transform_8(%arg0: i32) -> (i32, i32) {
    %c0_i32 = arith.constant 0 : i32
    %c0_i32_0 = arith.constant 0 : i32
    %c0_i32_1 = arith.constant 0 : i32
    return %c0_i32, %c0_i32_0 : i32, i32
  }
  func.func @transform_9(%arg0: i32) -> (i32, i32) {
    %c0_i32 = arith.constant 0 : i32
    %c0_i32_0 = arith.constant 0 : i32
    %c0_i32_1 = arith.constant 0 : i32
    return %c0_i32, %c0_i32_0 : i32, i32
  }
  func.func @transform_10(%arg0: i32) -> (i32, i32) {
    %c0_i32 = arith.constant 0 : i32
    %c0_i32_0 = arith.constant 0 : i32
    return %arg0, %c0_i32 : i32, i32
  }
  func.func @transform_11(%arg0: i32) -> (i32, i32) {
    %c0_i32 = arith.constant 0 : i32
    %c0_i32_0 = arith.constant 0 : i32
    return %arg0, %c0_i32 : i32, i32
  }
  func.func @transform_12(%arg0: i32) -> (i32, i32) {
    %c0_i32 = arith.constant 0 : i32
    %c0_i32_0 = arith.constant 0 : i32
    return %arg0, %c0_i32 : i32, i32
  }
  func.func @transform_13(%arg0: i32) -> (i32, i32) {
    %c0_i32 = arith.constant 0 : i32
    %c0_i32_0 = arith.constant 0 : i32
    return %arg0, %c0_i32 : i32, i32
  }
}

</mosaic_0001>

<llo_original>
// kernel: gaussian_policy_forward.1
$region0: #{gaussian_policy_forward.1}
  #allocation0 [shape = 'u32[]', space=smem, size = 0x4, offset = 0x4, fixed_abs, tag = 'smem constant byte address 0x4 - core index']
  #allocation1 [shape = 'u32[144,128]{1,0:T(1,128)}', space=vmem, size = 0x12000, scoped, tag = 'internal scratch']
  %s0 = inlined_call_operand.vmem [shape: f32[8,256], index: 0, kind: input, shape index: {}]
  %s1 = inlined_call_operand.vmem [shape: f32[8,256], index: 1, kind: input, shape index: {}]
  %s2 = inlined_call_operand.vmem [shape: bf16[256,128], index: 2, kind: input, shape index: {}]
  %s3 = inlined_call_operand.vmem [shape: f32[1,128], index: 3, kind: input, shape index: {}]
  %s4 = inlined_call_operand.vmem [shape: bf16[128,128], index: 4, kind: input, shape index: {}]
  %s5 = inlined_call_operand.vmem [shape: f32[1,128], index: 5, kind: input, shape index: {}]
  %s6 = inlined_call_operand.vmem [shape: bf16[128,256], index: 6, kind: input, shape index: {}]
  %s7 = inlined_call_operand.vmem [shape: f32[1,256], index: 7, kind: input, shape index: {}]
  %s8 = inlined_call_operand.vmem [shape: bf16[128,256], index: 8, kind: input, shape index: {}]
  %s9 = inlined_call_operand.vmem [shape: f32[1,256], index: 9, kind: input, shape index: {}]
  %s10 = inlined_call_operand.vmem [shape: f32[8,256], index: 10, kind: output, shape index: {0}]
  %s11 = inlined_call_operand.vmem [shape: f32[8,256], index: 11, kind: output, shape index: {1}]
  %s12 = inlined_call_operand.vmem [shape: f32[8,256], index: 12, kind: output, shape index: {2}]
  %s13 = inlined_call_operand.vmem [shape: f32[8,256], index: 13, kind: output, shape index: {3}]
  %14 = xla_tuple %s10, %s11, %s12, %s13
  %s15 = sld [smem:[#allocation0]]
  $region74: #{gaussian_policy_forward.1} parent=0
    _
  %s17 = ssub.s32 1, %s15
  %s18 = scalar_select 0, %s17, %s15
  // Predicated region
  $region2: #{gaussian_policy_forward.1} parent=0 // pred_check
    _
  $region3: #{gaussian_policy_forward.1} parent=0 // pred_check_branch
    %20 = sbr.rel (0) target = $region5
  $region4: #{gaussian_policy_forward.1} parent=0 // pred_region
    _
  $region5: #{gaussian_policy_forward.1} parent=0 // pred_fallthru
    _
  // Predicated region
  $region6: #{gaussian_policy_forward.1} parent=0 // pred_check
    _
  $region7: #{gaussian_policy_forward.1} parent=0 // pred_check_branch
    %22 = sbr.rel (0) target = $region9
  $region8: #{gaussian_policy_forward.1} parent=0 // pred_region
    _
  $region9: #{gaussian_policy_forward.1} parent=0 // pred_fallthru
    _
  // Predicated region
  $region10: #{gaussian_policy_forward.1} parent=0 // pred_check
    _
  $region11: #{gaussian_policy_forward.1} parent=0 // pred_check_branch
    %24 = sbr.rel (0) target = $region13
  $region12: #{gaussian_policy_forward.1} parent=0 // pred_region
    _
  $region13: #{gaussian_policy_forward.1} parent=0 // pred_fallthru
    _
  // Predicated region
  $region14: #{gaussian_policy_forward.1} parent=0 // pred_check
    _
  $region15: #{gaussian_policy_forward.1} parent=0 // pred_check_branch
    %26 = sbr.rel (0) target = $region17
  $region16: #{gaussian_policy_forward.1} parent=0 // pred_region
    _
  $region17: #{gaussian_policy_forward.1} parent=0 // pred_fallthru
    _
  // Predicated region
  $region18: #{gaussian_policy_forward.1} parent=0 // pred_check
    _
  $region19: #{gaussian_policy_forward.1} parent=0 // pred_check_branch
    %28 = sbr.rel (0) target = $region21
  $region20: #{gaussian_policy_forward.1} parent=0 // pred_region
    _
  $region21: #{gaussian_policy_forward.1} parent=0 // pred_fallthru
    _
  // Predicated region
  $region22: #{gaussian_policy_forward.1} parent=0 // pred_check
    _
  $region23: #{gaussian_policy_forward.1} parent=0 // pred_check_branch
    %30 = sbr.rel (0) target = $region25
  $region24: #{gaussian_policy_forward.1} parent=0 // pred_region
    _
  $region25: #{gaussian_policy_forward.1} parent=0 // pred_fallthru
    _
  // Predicated region
  $region26: #{gaussian_policy_forward.1} parent=0 // pred_check
    _
  $region27: #{gaussian_policy_forward.1} parent=0 // pred_check_branch
    %32 = sbr.rel (0) target = $region29
  $region28: #{gaussian_policy_forward.1} parent=0 // pred_region
    _
  $region29: #{gaussian_policy_forward.1} parent=0 // pred_fallthru
    _
  // Predicated region
  $region30: #{gaussian_policy_forward.1} parent=0 // pred_check
    _
  $region31: #{gaussian_policy_forward.1} parent=0 // pred_check_branch
    %34 = sbr.rel (0) target = $region33
  $region32: #{gaussian_policy_forward.1} parent=0 // pred_region
    _
  $region33: #{gaussian_policy_forward.1} parent=0 // pred_fallthru
    _
  // Predicated region
  $region34: #{gaussian_policy_forward.1} parent=0 // pred_check
    _
  $region35: #{gaussian_policy_forward.1} parent=0 // pred_check_branch
    %36 = sbr.rel (0) target = $region37
  $region36: #{gaussian_policy_forward.1} parent=0 // pred_region
    _
  $region37: #{gaussian_policy_forward.1} parent=0 // pred_fallthru
    _
  // Predicated region
  $region38: #{gaussian_policy_forward.1} parent=0 // pred_check
    _
  $region39: #{gaussian_policy_forward.1} parent=0 // pred_check_branch
    %38 = sbr.rel (0) target = $region41
  $region40: #{gaussian_policy_forward.1} parent=0 // pred_region
    _
  $region41: #{gaussian_policy_forward.1} parent=0 // pred_fallthru
    _
  %v40 = vld [vmem:[%s0] sm:$0xff]
  %v41 = vld [vmem:[%s0 + $0x8] sm:$0xff]
  %v42 = vpack.c.bf16 %v40, %v40
  %v43 = vpack.c.bf16 %v41, %v41
  %v44 = vld [vmem:[%s2] sm:$0xf]
  %v45 = vld [vmem:[%s2 + $0x4] sm:$0xf]
  %v46 = vld [vmem:[%s2 + $0x8] sm:$0xf]
  %v47 = vld [vmem:[%s2 + $0xc] sm:$0xf]
  %v48 = vld [vmem:[%s2 + $0x10] sm:$0xf]
  %v49 = vld [vmem:[%s2 + $0x14] sm:$0xf]
  %v50 = vld [vmem:[%s2 + $0x18] sm:$0xf]
  %v51 = vld [vmem:[%s2 + $0x1c] sm:$0xf]
  %v52 = vld [vmem:[%s2 + $0x20] sm:$0xf]
  %v53 = vld [vmem:[%s2 + $0x24] sm:$0xf]
  %v54 = vld [vmem:[%s2 + $0x28] sm:$0xf]
  %v55 = vld [vmem:[%s2 + $0x2c] sm:$0xf]
  %v56 = vld [vmem:[%s2 + $0x30] sm:$0xf]
  %v57 = vld [vmem:[%s2 + $0x34] sm:$0xf]
  %v58 = vld [vmem:[%s2 + $0x38] sm:$0xf]
  %v59 = vld [vmem:[%s2 + $0x3c] sm:$0xf]
  %v60 = vld [vmem:[%s2 + $0x40] sm:$0xf]
  %v61 = vld [vmem:[%s2 + $0x44] sm:$0xf]
  %v62 = vld [vmem:[%s2 + $0x48] sm:$0xf]
  %v63 = vld [vmem:[%s2 + $0x4c] sm:$0xf]
  %v64 = vld [vmem:[%s2 + $0x50] sm:$0xf]
  %v65 = vld [vmem:[%s2 + $0x54] sm:$0xf]
  %v66 = vld [vmem:[%s2 + $0x58] sm:$0xf]
  %v67 = vld [vmem:[%s2 + $0x5c] sm:$0xf]
  %v68 = vld [vmem:[%s2 + $0x60] sm:$0xf]
  %v69 = vld [vmem:[%s2 + $0x64] sm:$0xf]
  %v70 = vld [vmem:[%s2 + $0x68] sm:$0xf]
  %v71 = vld [vmem:[%s2 + $0x6c] sm:$0xf]
  %v72 = vld [vmem:[%s2 + $0x70] sm:$0xf]
  %v73 = vld [vmem:[%s2 + $0x74] sm:$0xf]
  %v74 = vld [vmem:[%s2 + $0x78] sm:$0xf]
  %v75 = vld [vmem:[%s2 + $0x7c] sm:$0xf]
  %v76 = vld [vmem:[%s3] sm:$0x1]
  %v78 = vlaneseq
  %v79 = vshrl.u32 %v78, 7
  %v80 = vsub.s32 0, %v79
  %v81 = vrot.slane %v76, %v80
  %v115 = vunpack.c.l.b16 %v44
  %v116 = vunpack.c.l.b16 %v45
  %v117 = vunpack.c.l.b16 %v46
  %v118 = vunpack.c.l.b16 %v47
  %v119 = vunpack.c.l.b16 %v48
  %v120 = vunpack.c.l.b16 %v49
  %v121 = vunpack.c.l.b16 %v50
  %v122 = vunpack.c.l.b16 %v51
  %v123 = vunpack.c.l.b16 %v52
  %v124 = vunpack.c.l.b16 %v53
  %v125 = vunpack.c.l.b16 %v54
  %v126 = vunpack.c.l.b16 %v55
  %v127 = vunpack.c.l.b16 %v56
  %v128 = vunpack.c.l.b16 %v57
  %v129 = vunpack.c.l.b16 %v58
  %v130 = vunpack.c.l.b16 %v59
  %v131 = vunpack.c.l.b16 %v60
  %v132 = vunpack.c.l.b16 %v61
  %v133 = vunpack.c.l.b16 %v62
  %v134 = vunpack.c.l.b16 %v63
  %v135 = vunpack.c.l.b16 %v64
  %v136 = vunpack.c.l.b16 %v65
  %v137 = vunpack.c.l.b16 %v66
  %v138 = vunpack.c.l.b16 %v67
  %v139 = vunpack.c.l.b16 %v68
  %v140 = vunpack.c.l.b16 %v69
  %v141 = vunpack.c.l.b16 %v70
  %v142 = vunpack.c.l.b16 %v71
  %v143 = vunpack.c.l.b16 %v72
  %v144 = vunpack.c.l.b16 %v73
  %v145 = vunpack.c.l.b16 %v74
  %v146 = vunpack.c.l.b16 %v75
  %v147 = vpack.c.b16 %v116, %v115
  %v148 = vpack.c.b16 %v118, %v117
  %v149 = vpack.c.b16 %v120, %v119
  %v150 = vpack.c.b16 %v122, %v121
  %v151 = vpack.c.b16 %v124, %v123
  %v152 = vpack.c.b16 %v126, %v125
  %v153 = vpack.c.b16 %v128, %v127
  %v154 = vpack.c.b16 %v130, %v129
  %v155 = vpack.c.b16 %v132, %v131
  %v156 = vpack.c.b16 %v134, %v133
  %v157 = vpack.c.b16 %v136, %v135
  %v158 = vpack.c.b16 %v138, %v137
  %v159 = vpack.c.b16 %v140, %v139
  %v160 = vpack.c.b16 %v142, %v141
  %v161 = vpack.c.b16 %v144, %v143
  %v162 = vpack.c.b16 %v146, %v145
  %179 = vmatprep.subr.bf16.mxu0 0
  %180 = vmatpush1.bf16.msra.mxu0 %v147
  %181 = vmatprep.subr.bf16.mxu0 0
  %182 = vmatpush1.bf16.msra.mxu0 %v148
  %183 = vmatprep.subr.bf16.mxu0 0
  %184 = vmatpush1.bf16.msra.mxu0 %v149
  %185 = vmatprep.subr.bf16.mxu0 0
  %186 = vmatpush1.bf16.msra.mxu0 %v150
  %187 = vmatprep.subr.bf16.mxu0 0
  %188 = vmatpush1.bf16.msra.mxu0 %v151
  %189 = vmatprep.subr.bf16.mxu0 0
  %190 = vmatpush1.bf16.msra.mxu0 %v152
  %191 = vmatprep.subr.bf16.mxu0 0
  %192 = vmatpush1.bf16.msra.mxu0 %v153
  %193 = vmatprep.subr.bf16.mxu0 0
  %194 = vmatpush1.bf16.msra.mxu0 %v154
  %195 = vmatprep.subr.bf16.mxu0 0
  %196 = vmatpush1.bf16.msra.mxu0 %v155
  %197 = vmatprep.subr.bf16.mxu0 0
  %198 = vmatpush1.bf16.msra.mxu0 %v156
  %199 = vmatprep.subr.bf16.mxu0 0
  %200 = vmatpush1.bf16.msra.mxu0 %v157
  %201 = vmatprep.subr.bf16.mxu0 0
  %202 = vmatpush1.bf16.msra.mxu0 %v158
  %203 = vmatprep.subr.bf16.mxu0 0
  %204 = vmatpush1.bf16.msra.mxu0 %v159
  %205 = vmatprep.subr.bf16.mxu0 0
  %206 = vmatpush1.bf16.msra.mxu0 %v160
  %207 = vmatprep.subr.bf16.mxu0 0
  %208 = vmatpush1.bf16.msra.mxu0 %v161
  %209 = vmatprep.subr.bf16.mxu0 0
  %210 = vmatpush1.bf16.msra.mxu0 %v162
  %211 = vmatprep.mubr.bf16.mxu0 %v43
  %212 = vmatmul.mubr.bf16.gmra.mrb[0].mxu0 %v42
  %v213 = vpop.f32.mrb[0].mxu0
  %v214 = vadd.f32 %v81, %v213
  %v215 = vpop.f32.mrb[0].mxu0
  %v216 = vpop.f32.mrb[0].mxu0
  %v217 = vpop.f32.mrb[0].mxu0
  %218 = vdwg.mxu0
  %v219 = vmax.f32 %v214, 0.0
  %v220 = vpack.c.bf16 %v219, %v219
  %v221 = vld [vmem:[%s4] sm:$0xf]
  %v222 = vld [vmem:[%s4 + $0x4] sm:$0xf]
  %v223 = vld [vmem:[%s4 + $0x8] sm:$0xf]
  %v224 = vld [vmem:[%s4 + $0xc] sm:$0xf]
  %v225 = vld [vmem:[%s4 + $0x10] sm:$0xf]
  %v226 = vld [vmem:[%s4 + $0x14] sm:$0xf]
  %v227 = vld [vmem:[%s4 + $0x18] sm:$0xf]
  %v228 = vld [vmem:[%s4 + $0x1c] sm:$0xf]
  %v229 = vld [vmem:[%s4 + $0x20] sm:$0xf]
  %v230 = vld [vmem:[%s4 + $0x24] sm:$0xf]
  %v231 = vld [vmem:[%s4 + $0x28] sm:$0xf]
  %v232 = vld [vmem:[%s4 + $0x2c] sm:$0xf]
  %v233 = vld [vmem:[%s4 + $0x30] sm:$0xf]
  %v234 = vld [vmem:[%s4 + $0x34] sm:$0xf]
  %v235 = vld [vmem:[%s4 + $0x38] sm:$0xf]
  %v236 = vld [vmem:[%s4 + $0x3c] sm:$0xf]
  %v237 = vld [vmem:[%s5] sm:$0x1]
  %v239 = vlaneseq
  %v240 = vshrl.u32 %v239, 7
  %v241 = vsub.s32 0, %v240
  %v242 = vrot.slane %v237, %v241
  %v260 = vunpack.c.l.b16 %v221
  %v261 = vunpack.c.l.b16 %v222
  %v262 = vunpack.c.l.b16 %v223
  %v263 = vunpack.c.l.b16 %v224
  %v264 = vunpack.c.l.b16 %v225
  %v265 = vunpack.c.l.b16 %v226
  %v266 = vunpack.c.l.b16 %v227
  %v267 = vunpack.c.l.b16 %v228
  %v268 = vunpack.c.l.b16 %v229
  %v269 = vunpack.c.l.b16 %v230
  %v270 = vunpack.c.l.b16 %v231
  %v271 = vunpack.c.l.b16 %v232
  %v272 = vunpack.c.l.b16 %v233
  %v273 = vunpack.c.l.b16 %v234
  %v274 = vunpack.c.l.b16 %v235
  %v275 = vunpack.c.l.b16 %v236
  %v276 = vpack.c.b16 %v261, %v260
  %v277 = vpack.c.b16 %v263, %v262
  %v278 = vpack.c.b16 %v265, %v264
  %v279 = vpack.c.b16 %v267, %v266
  %v280 = vpack.c.b16 %v269, %v268
  %v281 = vpack.c.b16 %v271, %v270
  %v282 = vpack.c.b16 %v273, %v272
  %v283 = vpack.c.b16 %v275, %v274
  %292 = vmatprep.subr.bf16.mxu0 0
  %293 = vmatpush1.bf16.msra.mxu0 %v276
  %294 = vmatprep.subr.bf16.mxu0 0
  %295 = vmatpush1.bf16.msra.mxu0 %v277
  %296 = vmatprep.subr.bf16.mxu0 0
  %297 = vmatpush1.bf16.msra.mxu0 %v278
  %298 = vmatprep.subr.bf16.mxu0 0
  %299 = vmatpush1.bf16.msra.mxu0 %v279
  %300 = vmatprep.subr.bf16.mxu0 0
  %301 = vmatpush1.bf16.msra.mxu0 %v280
  %302 = vmatprep.subr.bf16.mxu0 0
  %303 = vmatpush1.bf16.msra.mxu0 %v281
  %304 = vmatprep.subr.bf16.mxu0 0
  %305 = vmatpush1.bf16.msra.mxu0 %v282
  %306 = vmatprep.subr.bf16.mxu0 0
  %307 = vmatpush1.bf16.msra.mxu0 %v283
  %308 = vmatprep.subr.bf16.mxu0 0
  %309 = vmatpush1.bf16.msra.mxu0 0
  %310 = vmatprep.subr.bf16.mxu0 0
  %311 = vmatpush1.bf16.msra.mxu0 0
  %312 = vmatprep.subr.bf16.mxu0 0
  %313 = vmatpush1.bf16.msra.mxu0 0
  %314 = vmatprep.subr.bf16.mxu0 0
  %315 = vmatpush1.bf16.msra.mxu0 0
  %316 = vmatprep.subr.bf16.mxu0 0
  %317 = vmatpush1.bf16.msra.mxu0 0
  %318 = vmatprep.subr.bf16.mxu0 0
  %319 = vmatpush1.bf16.msra.mxu0 0
  %320 = vmatprep.subr.bf16.mxu0 0
  %321 = vmatpush1.bf16.msra.mxu0 0
  %322 = vmatprep.subr.bf16.mxu0 0
  %323 = vmatpush1.bf16.msra.mxu0 0
  %324 = vmatprep.mubr.bf16.mxu0 0
  %325 = vmatmul.mubr.bf16.gmra.mrb[0].mxu0 %v220
  %v326 = vpop.f32.mrb[0].mxu0
  %v327 = vadd.f32 %v242, %v326
  %v328 = vpop.f32.mrb[0].mxu0
  %v329 = vpop.f32.mrb[0].mxu0
  %v330 = vpop.f32.mrb[0].mxu0
  %331 = vdwg.mxu0
  %v332 = vmax.f32 %v327, 0.0
  %v333 = vpack.c.bf16 %v332, %v332
  %v334 = vld [vmem:[%s6] sm:$0xff]
  %v335 = vld [vmem:[%s6 + $0x8] sm:$0xff]
  %v336 = vld [vmem:[%s6 + $0x10] sm:$0xff]
  %v337 = vld [vmem:[%s6 + $0x18] sm:$0xff]
  %v338 = vld [vmem:[%s6 + $0x20] sm:$0xff]
  %v339 = vld [vmem:[%s6 + $0x28] sm:$0xff]
  %v340 = vld [vmem:[%s6 + $0x30] sm:$0xff]
  %v341 = vld [vmem:[%s6 + $0x38] sm:$0xff]
  %v342 = vld [vmem:[%s6 + $0x40] sm:$0xff]
  %v343 = vld [vmem:[%s6 + $0x48] sm:$0xff]
  %v344 = vld [vmem:[%s6 + $0x50] sm:$0xff]
  %v345 = vld [vmem:[%s6 + $0x58] sm:$0xff]
  %v346 = vld [vmem:[%s6 + $0x60] sm:$0xff]
  %v347 = vld [vmem:[%s6 + $0x68] sm:$0xff]
  %v348 = vld [vmem:[%s6 + $0x70] sm:$0xff]
  %v349 = vld [vmem:[%s6 + $0x78] sm:$0xff]
  %v350 = vld [vmem:[%s7] sm:$0x3]
  %v352 = vlaneseq
  %v353 = vshrl.u32 %v352, 7
  %v354 = vsub.s32 0, %v353
  %v355 = vrot.slane %v350, %v354
  %v356 = vlaneseq
  %v357 = vshrl.u32 %v356, 7
  %v358 = vsub.s32 1, %v357
  %v359 = vrot.slane %v350, %v358
  %v378 = vunpack.c.l.b16 %v334
  %v379 = vunpack.c.h.b16 %v334
  %v380 = vunpack.c.l.b16 %v335
  %v381 = vunpack.c.h.b16 %v335
  %v382 = vunpack.c.l.b16 %v336
  %v383 = vunpack.c.h.b16 %v336
  %v384 = vunpack.c.l.b16 %v337
  %v385 = vunpack.c.h.b16 %v337
  %v386 = vunpack.c.l.b16 %v338
  %v387 = vunpack.c.h.b16 %v338
  %v388 = vunpack.c.l.b16 %v339
  %v389 = vunpack.c.h.b16 %v339
  %v390 = vunpack.c.l.b16 %v340
  %v391 = vunpack.c.h.b16 %v340
  %v392 = vunpack.c.l.b16 %v341
  %v393 = vunpack.c.h.b16 %v341
  %v394 = vunpack.c.l.b16 %v342
  %v395 = vunpack.c.h.b16 %v342
  %v396 = vunpack.c.l.b16 %v343
  %v397 = vunpack.c.h.b16 %v343
  %v398 = vunpack.c.l.b16 %v344
  %v399 = vunpack.c.h.b16 %v344
  %v400 = vunpack.c.l.b16 %v345
  %v401 = vunpack.c.h.b16 %v345
  %v402 = vunpack.c.l.b16 %v346
  %v403 = vunpack.c.h.b16 %v346
  %v404 = vunpack.c.l.b16 %v347
  %v405 = vunpack.c.h.b16 %v347
  %v406 = vunpack.c.l.b16 %v348
  %v407 = vunpack.c.h.b16 %v348
  %v408 = vunpack.c.l.b16 %v349
  %v409 = vunpack.c.h.b16 %v349
  %v410 = vpack.c.b16 %v380, %v378
  %v411 = vpack.c.b16 %v381, %v379
  %v412 = vpack.c.b16 %v384, %v382
  %v413 = vpack.c.b16 %v385, %v383
  %v414 = vpack.c.b16 %v388, %v386
  %v415 = vpack.c.b16 %v389, %v387
  %v416 = vpack.c.b16 %v392, %v390
  %v417 = vpack.c.b16 %v393, %v391
  %v418 = vpack.c.b16 %v396, %v394
  %v419 = vpack.c.b16 %v397, %v395
  %v420 = vpack.c.b16 %v400, %v398
  %v421 = vpack.c.b16 %v401, %v399
  %v422 = vpack.c.b16 %v404, %v402
  %v423 = vpack.c.b16 %v405, %v403
  %v424 = vpack.c.b16 %v408, %v406
  %v425 = vpack.c.b16 %v409, %v407
  %442 = vmatprep.subr.bf16.mxu0 %v411
  %443 = vmatpush1.bf16.msra.mxu0 %v410
  %444 = vmatprep.subr.bf16.mxu0 %v413
  %445 = vmatpush1.bf16.msra.mxu0 %v412
  %446 = vmatprep.subr.bf16.mxu0 %v415
  %447 = vmatpush1.bf16.msra.mxu0 %v414
  %448 = vmatprep.subr.bf16.mxu0 %v417
  %449 = vmatpush1.bf16.msra.mxu0 %v416
  %450 = vmatprep.subr.bf16.mxu0 %v419
  %451 = vmatpush1.bf16.msra.mxu0 %v418
  %452 = vmatprep.subr.bf16.mxu0 %v421
  %453 = vmatpush1.bf16.msra.mxu0 %v420
  %454 = vmatprep.subr.bf16.mxu0 %v423
  %455 = vmatpush1.bf16.msra.mxu0 %v422
  %456 = vmatprep.subr.bf16.mxu0 %v425
  %457 = vmatpush1.bf16.msra.mxu0 %v424
  %458 = vmatprep.subr.bf16.mxu0 0
  %459 = vmatpush1.bf16.msra.mxu0 0
  %460 = vmatprep.subr.bf16.mxu0 0
  %461 = vmatpush1.bf16.msra.mxu0 0
  %462 = vmatprep.subr.bf16.mxu0 0
  %463 = vmatpush1.bf16.msra.mxu0 0
  %464 = vmatprep.subr.bf16.mxu0 0
  %465 = vmatpush1.bf16.msra.mxu0 0
  %466 = vmatprep.subr.bf16.mxu0 0
  %467 = vmatpush1.bf16.msra.mxu0 0
  %468 = vmatprep.subr.bf16.mxu0 0
  %469 = vmatpush1.bf16.msra.mxu0 0
  %470 = vmatprep.subr.bf16.mxu0 0
  %471 = vmatpush1.bf16.msra.mxu0 0
  %472 = vmatprep.subr.bf16.mxu0 0
  %473 = vmatpush1.bf16.msra.mxu0 0
  %474 = vmatprep.mubr.bf16.mxu0 0
  %475 = vmatmul.mubr.bf16.gmra.mrb[0].mxu0 %v333
  %v476 = vpop.f32.mrb[0].mxu0
  %v477 = vadd.f32 %v355, %v476
  %v478 = vpop.f32.mrb[0].mxu0
  %v479 = vadd.f32 %v359, %v478
  %v480 = vpop.f32.mrb[0].mxu0
  %v481 = vpop.f32.mrb[0].mxu0
  %482 = vdwg.mxu0
  %v483 = vld [vmem:[%s8] sm:$0xff]
  %v484 = vld [vmem:[%s8 + $0x8] sm:$0xff]
  %v485 = vld [vmem:[%s8 + $0x10] sm:$0xff]
  %v486 = vld [vmem:[%s8 + $0x18] sm:$0xff]
  %v487 = vld [vmem:[%s8 + $0x20] sm:$0xff]
  %v488 = vld [vmem:[%s8 + $0x28] sm:$0xff]
  %v489 = vld [vmem:[%s8 + $0x30] sm:$0xff]
  %v490 = vld [vmem:[%s8 + $0x38] sm:$0xff]
  %v491 = vld [vmem:[%s8 + $0x40] sm:$0xff]
  %v492 = vld [vmem:[%s8 + $0x48] sm:$0xff]
  %v493 = vld [vmem:[%s8 + $0x50] sm:$0xff]
  %v494 = vld [vmem:[%s8 + $0x58] sm:$0xff]
  %v495 = vld [vmem:[%s8 + $0x60] sm:$0xff]
  %v496 = vld [vmem:[%s8 + $0x68] sm:$0xff]
  %v497 = vld [vmem:[%s8 + $0x70] sm:$0xff]
  %v498 = vld [vmem:[%s8 + $0x78] sm:$0xff]
  %v499 = vld [vmem:[%s9] sm:$0x3]
  %v501 = vlaneseq
  %v502 = vshrl.u32 %v501, 7
  %v503 = vsub.s32 0, %v502
  %v504 = vrot.slane %v499, %v503
  %v505 = vlaneseq
  %v506 = vshrl.u32 %v505, 7
  %v507 = vsub.s32 1, %v506
  %v508 = vrot.slane %v499, %v507
  %v527 = vunpack.c.l.b16 %v483
  %v528 = vunpack.c.h.b16 %v483
  %v529 = vunpack.c.l.b16 %v484
  %v530 = vunpack.c.h.b16 %v484
  %v531 = vunpack.c.l.b16 %v485
  %v532 = vunpack.c.h.b16 %v485
  %v533 = vunpack.c.l.b16 %v486
  %v534 = vunpack.c.h.b16 %v486
  %v535 = vunpack.c.l.b16 %v487
  %v536 = vunpack.c.h.b16 %v487
  %v537 = vunpack.c.l.b16 %v488
  %v538 = vunpack.c.h.b16 %v488
  %v539 = vunpack.c.l.b16 %v489
  %v540 = vunpack.c.h.b16 %v489
  %v541 = vunpack.c.l.b16 %v490
  %v542 = vunpack.c.h.b16 %v490
  %v543 = vunpack.c.l.b16 %v491
  %v544 = vunpack.c.h.b16 %v491
  %v545 = vunpack.c.l.b16 %v492
  %v546 = vunpack.c.h.b16 %v492
  %v547 = vunpack.c.l.b16 %v493
  %v548 = vunpack.c.h.b16 %v493
  %v549 = vunpack.c.l.b16 %v494
  %v550 = vunpack.c.h.b16 %v494
  %v551 = vunpack.c.l.b16 %v495
  %v552 = vunpack.c.h.b16 %v495
  %v553 = vunpack.c.l.b16 %v496
  %v554 = vunpack.c.h.b16 %v496
  %v555 = vunpack.c.l.b16 %v497
  %v556 = vunpack.c.h.b16 %v497
  %v557 = vunpack.c.l.b16 %v498
  %v558 = vunpack.c.h.b16 %v498
  %v559 = vpack.c.b16 %v529, %v527
  %v560 = vpack.c.b16 %v530, %v528
  %v561 = vpack.c.b16 %v533, %v531
  %v562 = vpack.c.b16 %v534, %v532
  %v563 = vpack.c.b16 %v537, %v535
  %v564 = vpack.c.b16 %v538, %v536
  %v565 = vpack.c.b16 %v541, %v539
  %v566 = vpack.c.b16 %v542, %v540
  %v567 = vpack.c.b16 %v545, %v543
  %v568 = vpack.c.b16 %v546, %v544
  %v569 = vpack.c.b16 %v549, %v547
  %v570 = vpack.c.b16 %v550, %v548
  %v571 = vpack.c.b16 %v553, %v551
  %v572 = vpack.c.b16 %v554, %v552
  %v573 = vpack.c.b16 %v557, %v555
  %v574 = vpack.c.b16 %v558, %v556
  %591 = vmatprep.subr.bf16.mxu0 %v560
  %592 = vmatpush1.bf16.msra.mxu0 %v559
  %593 = vmatprep.subr.bf16.mxu0 %v562
  %594 = vmatpush1.bf16.msra.mxu0 %v561
  %595 = vmatprep.subr.bf16.mxu0 %v564
  %596 = vmatpush1.bf16.msra.mxu0 %v563
  %597 = vmatprep.subr.bf16.mxu0 %v566
  %598 = vmatpush1.bf16.msra.mxu0 %v565
  %599 = vmatprep.subr.bf16.mxu0 %v568
  %600 = vmatpush1.bf16.msra.mxu0 %v567
  %601 = vmatprep.subr.bf16.mxu0 %v570
  %602 = vmatpush1.bf16.msra.mxu0 %v569
  %603 = vmatprep.subr.bf16.mxu0 %v572
  %604 = vmatpush1.bf16.msra.mxu0 %v571
  %605 = vmatprep.subr.bf16.mxu0 %v574
  %606 = vmatpush1.bf16.msra.mxu0 %v573
  %607 = vmatprep.subr.bf16.mxu0 0
  %608 = vmatpush1.bf16.msra.mxu0 0
  %609 = vmatprep.subr.bf16.mxu0 0
  %610 = vmatpush1.bf16.msra.mxu0 0
  %611 = vmatprep.subr.bf16.mxu0 0
  %612 = vmatpush1.bf16.msra.mxu0 0
  %613 = vmatprep.subr.bf16.mxu0 0
  %614 = vmatpush1.bf16.msra.mxu0 0
  %615 = vmatprep.subr.bf16.mxu0 0
  %616 = vmatpush1.bf16.msra.mxu0 0
  %617 = vmatprep.subr.bf16.mxu0 0
  %618 = vmatpush1.bf16.msra.mxu0 0
  %619 = vmatprep.subr.bf16.mxu0 0
  %620 = vmatpush1.bf16.msra.mxu0 0
  %621 = vmatprep.subr.bf16.mxu0 0
  %622 = vmatpush1.bf16.msra.mxu0 0
  %623 = vmatprep.mubr.bf16.mxu0 0
  %624 = vmatmul.mubr.bf16.gmra.mrb[0].mxu0 %v333
  %v625 = vpop.f32.mrb[0].mxu0
  %v626 = vadd.f32 %v504, %v625
  %v627 = vpop.f32.mrb[0].mxu0
  %v628 = vadd.f32 %v508, %v627
  %v629 = vpop.f32.mrb[0].mxu0
  %v630 = vpop.f32.mrb[0].mxu0
  %631 = vdwg.mxu0
  %v632 = vmax.f32 %v626, -20.0
  %v633 = vmax.f32 %v628, -20.0
  %v634 = vmin.f32 %v632, 2.0
  %v635 = vmin.f32 %v633, 2.0
  %v636 = vmul.f32 %v634, 1.442695
  %v637 = vpow.pop %v636
  %v638 = vmul.f32 %v635, 1.442695
  %v639 = vpow.pop %v638
  %v640 = vld [vmem:[%s1] sm:$0xff]
  %v641 = vld [vmem:[%s1 + $0x8] sm:$0xff]
  %v642 = vmul.f32 %v637, %v640
  %v643 = vmul.f32 %v639, %v641
  %v644 = vadd.f32 %v477, %v642
  %v645 = vadd.f32 %v479, %v643
  %v646 = vsub.f32 %v644, %v477
  %v647 = vsub.f32 %v645, %v479
  %v648 = vmul.f32 %v646, %v646
  %v649 = vmul.f32 %v647, %v647
  %v650 = vsub.f32 0.0, %v648
  %v651 = vsub.f32 0.0, %v649
  %v652 = vmul.f32 %v637, 2.0
  %v653 = vmul.f32 %v639, 2.0
  %v654 = vmul.f32 %v652, %v637
  %v655 = vmul.f32 %v653, %v639
  %v656 = vrcp.pop %v654
  %v657 = vmul.f32 %v650, %v656
  %v658 = vrcp.pop %v655
  %v659 = vmul.f32 %v651, %v658
  %v660 = vsub.f32 %v657, %v634
  %v661 = vsub.f32 %v659, %v635
  %v662 = vsub.f32 %v660, 0.9189385
  %v663 = vsub.f32 %v661, 0.9189385
  %664 = vst [vmem:[%s10] sm:$0xff] %v644
  %665 = vst [vmem:[%s10 + $0x8] sm:$0xff] %v645
  %666 = vst [vmem:[%s11] sm:$0xff] %v477
  %667 = vst [vmem:[%s11 + $0x8] sm:$0xff] %v479
  %668 = vst [vmem:[%s12] sm:$0xff] %v634
  %669 = vst [vmem:[%s12 + $0x8] sm:$0xff] %v635
  %670 = vst [vmem:[%s13] sm:$0xff] %v662
  %671 = vst [vmem:[%s13 + $0x8] sm:$0xff] %v663
  // Predicated region
  $region42: #{gaussian_policy_forward.1} parent=0 // pred_check
    _
  $region43: #{gaussian_policy_forward.1} parent=0 // pred_check_branch
    %673 = sbr.rel (0) target = $region45
  $region44: #{gaussian_policy_forward.1} parent=0 // pred_region
    _
  $region45: #{gaussian_policy_forward.1} parent=0 // pred_fallthru
    _
  // Predicated region
  $region46: #{gaussian_policy_forward.1} parent=0 // pred_check
    _
  $region47: #{gaussian_policy_forward.1} parent=0 // pred_check_branch
    %675 = sbr.rel (0) target = $region49
  $region48: #{gaussian_policy_forward.1} parent=0 // pred_region
    _
  $region49: #{gaussian_policy_forward.1} parent=0 // pred_fallthru
    _
  // Predicated region
  $region50: #{gaussian_policy_forward.1} parent=0 // pred_check
    _
  $region51: #{gaussian_policy_forward.1} parent=0 // pred_check_branch
    %677 = sbr.rel (0) target = $region53
  $region52: #{gaussian_policy_forward.1} parent=0 // pred_region
    _
  $region53: #{gaussian_policy_forward.1} parent=0 // pred_fallthru
    _
  // Predicated region
  $region54: #{gaussian_policy_forward.1} parent=0 // pred_check
    _
  $region55: #{gaussian_policy_forward.1} parent=0 // pred_check_branch
    %679 = sbr.rel (0) target = $region57
  $region56: #{gaussian_policy_forward.1} parent=0 // pred_region
    _
  $region57: #{gaussian_policy_forward.1} parent=0 // pred_fallthru
    _
  // Predicated region
  $region58: #{gaussian_policy_forward.1} parent=0 // pred_check
    _
  $region59: #{gaussian_policy_forward.1} parent=0 // pred_check_branch
    %681 = sbr.rel (0) target = $region61
  $region60: #{gaussian_policy_forward.1} parent=0 // pred_region
    _
  $region61: #{gaussian_policy_forward.1} parent=0 // pred_fallthru
    _
  // Predicated region
  $region62: #{gaussian_policy_forward.1} parent=0 // pred_check
    _
  $region63: #{gaussian_policy_forward.1} parent=0 // pred_check_branch
    %683 = sbr.rel (0) target = $region65
  $region64: #{gaussian_policy_forward.1} parent=0 // pred_region
    _
  $region65: #{gaussian_policy_forward.1} parent=0 // pred_fallthru
    _
  // Predicated region
  $region66: #{gaussian_policy_forward.1} parent=0 // pred_check
    _
  $region67: #{gaussian_policy_forward.1} parent=0 // pred_check_branch
    %685 = sbr.rel (0) target = $region69
  $region68: #{gaussian_policy_forward.1} parent=0 // pred_region
    _
  $region69: #{gaussian_policy_forward.1} parent=0 // pred_fallthru
    _
  // Predicated region
  $region70: #{gaussian_policy_forward.1} parent=0 // pred_check
    _
  $region71: #{gaussian_policy_forward.1} parent=0 // pred_check_branch
    %687 = sbr.rel (0) target = $region73
  $region72: #{gaussian_policy_forward.1} parent=0 // pred_region
    _
  $region73: #{gaussian_policy_forward.1} parent=0 // pred_fallthru
    _

</llo_original>
